<compile_context>
chip_gen: v7x
topology: tpu7x:2x2x1
jax: 0.10.0
libtpu: 0.0.40
codegen_flags: <defaults>
</compile_context>

<pallas_src>
import functools

import jax
import jax.numpy as jnp
from jax.experimental import pallas as pl
from jax.experimental.pallas import tpu as pltpu


def _round_up(x, m):
    return ((x + m - 1) // m) * m


def _loss_kernel(x_ref, t_ref, o_ref, *, loss_type, eps, d, td, nkg,
                 need_mask, single_step):
    """Accumulate per-sample partial sums into the resident (TB, 1) output block."""
    g = pl.program_id(1)
    k = pl.program_id(2)
    b = g * nkg + k                       # conceptual block index along D

    diff = x_ref[...].astype(jnp.float32) - t_ref[...].astype(jnp.float32)
    if loss_type == "l2":
        contrib = diff * diff             # sqrt(eps + sum) applied in wrapper
    else:  # "l1"
        contrib = jnp.sqrt(diff * diff + eps)

    def _psum(c):
        # cross-lane reduce -> XLU slot, hidden under the HBM DMA
        return jnp.sum(c, axis=1, keepdims=True)

    def _masked_psum():
        col = jax.lax.broadcasted_iota(jnp.int32, contrib.shape, 1) + b * td
        return _psum(jnp.where(col < d, contrib, 0.0))

    if single_step:
        # One feature block per output block: no init / accumulate / finalize.
        o_ref[...] = _masked_psum() if need_mask else _psum(contrib)
        return

    @pl.when(k == 0)
    def _():
        o_ref[...] = jnp.zeros_like(o_ref)

    if need_mask:
        # Only blocks overhanging D (the D tail and/or phantom blocks from the
        # megacore D-split) pay for the iota/compare/select.
        tail = (b + 1) * td > d

        @pl.when(jnp.logical_not(tail))
        def _():
            o_ref[...] += _psum(contrib)

        @pl.when(tail)
        def _():
            o_ref[...] += _masked_psum()
    else:
        o_ref[...] += _psum(contrib)


def pallas_loss(x, target, loss_type="l2", eps=1e-6,
                block_bytes=4 * 1024 * 1024):
    """x, target: N-leading arrays (e.g. NCHW). Returns a scalar f32 loss."""
    if loss_type not in ("l2", "l1"):
        raise ValueError(f"loss_type '{loss_type}' is not supported.")
    assert x.shape == target.shape, "x / target shapes must match"
    assert x.dtype == target.dtype, "x / target dtypes must match"

    N = int(x.shape[0])
    D = 1
    for s in x.shape[1:]:
        D *= int(s)

    x2 = x.reshape(N, D)
    t2 = target.reshape(N, D)

    itemsize = jnp.dtype(x.dtype).itemsize
    sublane = {4: 8, 2: 16, 1: 32}.get(itemsize, 8)

    # ---- budget-driven tile selection (HBM-bandwidth-bound kernel) --------
    budget_elems = max(block_bytes // itemsize, sublane * 128)

    td_budget = max(128, ((budget_elems // sublane) // 128) * 128)
    if D <= td_budget:
        td = D                       # one feature block, no lane mask needed
    else:
        td = td_budget               # multiple of 128; last block is partial

    tb = max(sublane, ((budget_elems // td) // sublane) * sublane)
    tb = min(tb, _round_up(N, sublane))
    # megacore: prefer >= 2 batch blocks when the batch allows it
    if pl.cdiv(N, tb) < 2 and N > sublane:
        tb = _round_up(pl.cdiv(N, 2), sublane)
    if tb > N:                       # never exceed the array dim
        tb = N if N < sublane else (N // sublane) * sublane

    ni = pl.cdiv(N, tb)
    nk_total = pl.cdiv(D, td)

    # If there is only one batch block, split the feature reduction into two
    # independent ("parallel") groups so both v7x TensorCores get work.
    if ni == 1 and nk_total >= 2:
        groups = 2
        nkg = pl.cdiv(nk_total, 2)
    else:
        groups = 1
        nkg = nk_total

    has_phantom = groups * nkg > nk_total
    need_mask = (D % td != 0) or has_phantom
    single_step = (nkg == 1)

    if has_phantom:
        last_b = nk_total - 1

        def in_map(i, g, k):
            return (i, jnp.minimum(g * nkg + k, last_b))
    else:
        def in_map(i, g, k):
            return (i, g * nkg + k)

    kernel = functools.partial(
        _loss_kernel,
        loss_type=loss_type,
        eps=float(eps),
        d=int(D),
        td=int(td),
        nkg=int(nkg),
        need_mask=bool(need_mask),
        single_step=bool(single_step),
    )

    partial_sums = pl.pallas_call(
        kernel,
        out_shape=jax.ShapeDtypeStruct((groups, N, 1), jnp.float32),
        grid_spec=pltpu.PrefetchScalarGridSpec(
            num_scalar_prefetch=0,
            grid=(ni, groups, nkg),
            in_specs=[
                pl.BlockSpec((tb, td), in_map),
                pl.BlockSpec((tb, td), in_map),
            ],
            out_specs=pl.BlockSpec((None, tb, 1), lambda i, g, k: (g, i, 0)),
        ),
        compiler_params=pltpu.CompilerParams(
            dimension_semantics=("parallel", "parallel", "arbitrary"),
            vmem_limit_bytes=32 * 1024 * 1024,
        ),
    )(x2, t2)

    # Finalize on the tiny (groups, N) result: combine D-groups, eps/sqrt, mean.
    row_sum = jnp.sum(partial_sums[:, :, 0], axis=0)        # (N,)
    if loss_type == "l2":
        per_sample = jnp.sqrt(eps + row_sum)
    else:
        per_sample = row_sum
    return jnp.mean(per_sample)


def _reference_loss(x, target, loss_type="l2", eps=1e-6):
    axes = tuple(range(1, x.ndim))
    diff = x.astype(jnp.float32) - target.astype(jnp.float32)
    if loss_type == "l2":
        return jnp.mean(jnp.sqrt(eps + jnp.sum(diff * diff, axis=axes)))
    return jnp.mean(jnp.sum(jnp.sqrt(diff * diff + eps), axis=axes))


if __name__ == "__main__":
    key = jax.random.PRNGKey(0)

    ok = True
    # (shape, block_bytes): the small block_bytes case exercises the
    # multi-block reduction, the megacore D-split, and the tail/phantom masks.
    cases = [
        ((2, 4, 16, 16), 4 * 1024 * 1024),
        ((3, 3, 7, 9), 4 * 1024 * 1024),
        ((2, 3, 10, 20), 8 * 1024),
    ]
    for idx, (shape, bb) in enumerate(cases):
        kx, kt = jax.random.split(jax.random.fold_in(key, idx))
        xv = jax.random.normal(kx, shape, dtype=jnp.float32)
        tv = jax.random.normal(kt, shape, dtype=jnp.float32)
        for lt in ("l2", "l1"):
            out = jax.block_until_ready(
                pallas_loss(xv, tv, loss_type=lt, block_bytes=bb))
            ref = _reference_loss(xv, tv, loss_type=lt)
            if not jnp.allclose(out, ref, rtol=1e-5, atol=1e-5):
                ok = False
                print(f"MISMATCH shape={shape} {lt}: pallas={out} ref={ref}")

    if ok:
        print("KERNEL_OK")
</pallas_src>

<mosaic_0001>
module attributes {stable_mosaic.version = 11 : i64} {
  func.func @_loss_kernel(%arg0: i32, %arg1: i32, %arg2: i32, %arg3: memref<2x1024xf32, #tpu.memory_space<vmem>>, %arg4: memref<2x1024xf32, #tpu.memory_space<vmem>>, %arg5: memref<1x2x1xf32, #tpu.memory_space<vmem>>) attributes {dimension_semantics = [#tpu.dimension_semantics<parallel>, #tpu.dimension_semantics<parallel>, #tpu.dimension_semantics<arbitrary>], iteration_bounds = array<i64: 1, 1, 1>, scalar_prefetch = 0 : i64, scratch_operands = 0 : i64, tpu.core_type = #tpu.core_type<tc>, window_params = [{transform_indices = @transform_0, window_bounds = array<i64: 2, 1024>}, {transform_indices = @transform_1, window_bounds = array<i64: 2, 1024>}, {transform_indices = @transform_2, window_bounds = array<i64: 1, 2, 1>}]} {
    %c0 = arith.constant 0 : index
    %c0_0 = arith.constant 0 : index
    %0 = vector.load %arg3[%c0, %c0_0] : memref<2x1024xf32, #tpu.memory_space<vmem>>, vector<2x1024xf32>
    %c0_1 = arith.constant 0 : index
    %c0_2 = arith.constant 0 : index
    %1 = vector.load %arg4[%c0_1, %c0_2] : memref<2x1024xf32, #tpu.memory_space<vmem>>, vector<2x1024xf32>
    %2 = arith.subf %0, %1 : vector<2x1024xf32>
    %3 = arith.mulf %2, %2 : vector<2x1024xf32>
    %cst = arith.constant dense<0.000000e+00> : vector<2xf32>
    %4 = vector.multi_reduction <add>, %3, %cst [1] : vector<2x1024xf32> to vector<2xf32>
    %5 = vector.shape_cast %4 : vector<2xf32> to vector<2x1xf32>
    %c0_3 = arith.constant 0 : index
    %c0_4 = arith.constant 0 : index
    %c0_5 = arith.constant 0 : index
    %6 = vector.load %arg5[%c0_3, %c0_4, %c0_5] : memref<1x2x1xf32, #tpu.memory_space<vmem>>, vector<1x2x1xf32>
    %7 = vector.shape_cast %6 : vector<1x2x1xf32> to vector<2x1xf32>
    %8 = vector.shape_cast %5 : vector<2x1xf32> to vector<1x2x1xf32>
    tpu.vector_store %arg5[%c0_3, %c0_4, %c0_5], %8 {strides = array<i32>} : memref<1x2x1xf32, #tpu.memory_space<vmem>>, vector<1x2x1xf32>,
    return
  }
  func.func @transform_0(%arg0: i32, %arg1: i32, %arg2: i32) -> (i32, i32) {
    %c1_i32 = arith.constant 1 : i32
    %0 = arith.muli %arg1, %c1_i32 : i32
    %1 = arith.addi %0, %arg2 : i32
    %c0_i32 = arith.constant 0 : i32
    return %arg0, %1 : i32, i32
  }
  func.func @transform_1(%arg0: i32, %arg1: i32, %arg2: i32) -> (i32, i32) {
    %c1_i32 = arith.constant 1 : i32
    %0 = arith.muli %arg1, %c1_i32 : i32
    %1 = arith.addi %0, %arg2 : i32
    %c0_i32 = arith.constant 0 : i32
    return %arg0, %1 : i32, i32
  }
  func.func @transform_2(%arg0: i32, %arg1: i32, %arg2: i32) -> (i32, i32, i32) {
    %c0_i32 = arith.constant 0 : i32
    %c0_i32_0 = arith.constant 0 : i32
    return %arg1, %arg0, %c0_i32 : i32, i32, i32
  }
}

</mosaic_0001>

<llo_original>
// kernel: tpu_custom_call.1
$region0: #{tpu_custom_call.1}
  #allocation0 [shape = 'u32[]', space=smem, size = 0x4, offset = 0x4, fixed_abs, tag = 'smem constant byte address 0x4 - core index']
  #allocation1 [shape = 'u32[144,128]{1,0:T(1,128)}', space=vmem, size = 0x12000, scoped, tag = 'internal scratch']
  %s0 = inlined_call_operand.hbm [shape: f32[2,1024], index: 0, kind: input, shape index: {}]
  %s1 = inlined_call_operand.hbm [shape: f32[2,1024], index: 1, kind: input, shape index: {}]
  %s2 = inlined_call_operand.vmem [shape: f32[1,2,1], index: 2, kind: output, shape index: {}]
  %s3 = sld [smem:[#allocation0]]
  $region26: #{tpu_custom_call.1} parent=0
    _
  %s5 = ssub.s32 1, %s3
  %s6 = scalar_select 0, %s5, %s3
  $region1: #{tpu_custom_call.1} parent=0
    #allocation2 [shape = 'u8[8192]{0}', space=vmem, size = 0x2000, scoped, tag = 'input window, operand 0, single buffered']
    #allocation3 [shape = 's32[1]{0}', space=sflag, size = 0x4, scoped, tag = 'scoped memory for tpu_custom_call.1']
    #allocation4 [shape = 'u8[8192]{0}', space=vmem, size = 0x2000, scoped, tag = 'input window, operand 1, single buffered']
    #allocation5 [shape = 's32[1]{0}', space=sflag, size = 0x4, scoped, tag = 'scoped memory for tpu_custom_call.1']
    %7 = vsyncpa [#allocation3], 0
    %8 = vsyncpa [#allocation5], 0
    // Predicated region
    $region2: #{tpu_custom_call.1} parent=1 // pred_check
      _
    $region3: #{tpu_custom_call.1} parent=1 // pred_check_branch
      %10 = sbr.rel (0) target = $region5
    $region4: #{tpu_custom_call.1} parent=1 // pred_region
      %s11 = sadd.s32 0, 0
      %s12 = smul.u32 8, %s11
      %s14 = ssub.s32 256, 256
      %15 = vsyncadd [#allocation3], %s14
      %s16 = smul.addr %s12, 32
      %s17 = scalar_lea.hbm %s0, %s16
      %s19 = sshll.u32 [#allocation2], 4
      %s20 = int_to_ptr.vmem [resolvable:$true] %s19
      %22 = dma.hbm_to_vmem [thread:$0]  %s17, 256, %s20, [#allocation3]
    $region5: #{tpu_custom_call.1} parent=1 // pred_fallthru
      _
    // Predicated region
    $region6: #{tpu_custom_call.1} parent=1 // pred_check
      _
    $region7: #{tpu_custom_call.1} parent=1 // pred_check_branch
      %24 = sbr.rel (0) target = $region9
    $region8: #{tpu_custom_call.1} parent=1 // pred_region
      %s25 = sadd.s32 0, 0
      %s26 = smul.u32 8, %s25
      %s28 = ssub.s32 256, 256
      %29 = vsyncadd [#allocation5], %s28
      %s30 = smul.addr %s26, 32
      %s31 = scalar_lea.hbm %s1, %s30
      %s33 = sshll.u32 [#allocation4], 4
      %s34 = int_to_ptr.vmem [resolvable:$true] %s33
      %36 = dma.hbm_to_vmem [thread:$0]  %s31, 256, %s34, [#allocation5]
    $region9: #{tpu_custom_call.1} parent=1 // pred_fallthru
      _
    // Predicated region
    $region10: #{tpu_custom_call.1} parent=1 // pred_check
      _
    $region11: #{tpu_custom_call.1} parent=1 // pred_check_branch
      %38 = sbr.rel (0) target = $region13
    $region12: #{tpu_custom_call.1} parent=1 // pred_region
      %39 = dma.done [#allocation3], 256
    $region13: #{tpu_custom_call.1} parent=1 // pred_fallthru
      _
    // Predicated region
    $region14: #{tpu_custom_call.1} parent=1 // pred_check
      _
    $region15: #{tpu_custom_call.1} parent=1 // pred_check_branch
      %41 = sbr.rel (0) target = $region17
    $region16: #{tpu_custom_call.1} parent=1 // pred_region
      %42 = dma.done [#allocation5], 256
    $region17: #{tpu_custom_call.1} parent=1 // pred_fallthru
      _
    %s43 = sadd.s32 0, 0
    %s44 = smul.u32 8, %s43
    %s45 = sadd.s32 0, 0
    %s46 = smul.u32 8, %s45
    %v47 = vld [vmem:[#allocation2] sm:$0xff]
    %v48 = vld [vmem:[#allocation2 + $0x8] sm:$0xff]
    %v49 = vld [vmem:[#allocation4] sm:$0xff]
    %v50 = vld [vmem:[#allocation4 + $0x8] sm:$0xff]
    %v51 = vsub.f32 %v47, %v49
    %v52 = vsub.f32 %v48, %v50
    %v53 = vmul.f32 %v51, %v51
    %v54 = vmul.f32 %v52, %v52
    %v57 = vcombine.high %v53, %v53
    %v59 = vunpack.c.l.s4 1983009808
    %v60 = vunpack.c.0.s8 %v59
    %v61 = vlaneseq
    %v62 = vshrl.u32 %v61, 7
    %v63 = vsub.s32 %v60, %v62
    %v64 = vrot.slane %v53, %v63
    %v66 = vunpack.c.l.s4 1983009808
    %v67 = vunpack.c.0.s8 %v66
    %v68 = vlaneseq
    %v69 = vshrl.u32 %v68, 7
    %v70 = vsub.s32 %v67, %v69
    %v71 = vrot.slane %v57, %v70
    %v72 = vcombine.high %v64, %v64
    %v73 = vcombine.high %v71, %v71
    %v74 = vcombine.high %v54, %v54
    %v76 = vunpack.c.l.s4 1983009808
    %v77 = vunpack.c.0.s8 %v76
    %v78 = vlaneseq
    %v79 = vshrl.u32 %v78, 7
    %v80 = vsub.s32 %v77, %v79
    %v81 = vrot.slane %v54, %v80
    %v83 = vunpack.c.l.s4 1983009808
    %v84 = vunpack.c.0.s8 %v83
    %v85 = vlaneseq
    %v86 = vshrl.u32 %v85, 7
    %v87 = vsub.s32 %v84, %v86
    %v88 = vrot.slane %v74, %v87
    %v89 = vcombine.high %v81, %v81
    %v90 = vcombine.high %v88, %v88
    %vm99 = vcmask 1041408
    %v100 = vsel %vm99, %v64, 0.0
    %v101 = vsel %vm99, %v72, 0.0
    %v102 = vadd.f32 %v100, %v101
    %v103 = vsel %vm99, %v71, 0.0
    %v104 = vadd.f32 %v102, %v103
    %v105 = vsel %vm99, %v73, 0.0
    %v106 = vadd.f32 %v104, %v105
    %v107 = vsel %vm99, %v81, 0.0
    %v108 = vadd.f32 %v106, %v107
    %v109 = vsel %vm99, %v89, 0.0
    %v110 = vadd.f32 %v108, %v109
    %v111 = vsel %vm99, %v88, 0.0
    %v112 = vadd.f32 %v110, %v111
    %v113 = vsel %vm99, %v90, 0.0
    %v114 = vadd.f32 %v112, %v113
    %115 = vadd.xlane.f32.xlu0 %v114
    %v116 = vpop.xlane.xlu0 %115
    %vm117 = vcmask 1024
    %118 = vst.msk [vmem:[%s2] sm:$0x3] %vm117, %v116
    // Predicated region
    $region18: #{tpu_custom_call.1} parent=1 // pred_check
      _
    $region19: #{tpu_custom_call.1} parent=1 // pred_check_branch
      %120 = sbr.rel (0) target = $region21
    $region20: #{tpu_custom_call.1} parent=1 // pred_region
      _
    $region21: #{tpu_custom_call.1} parent=1 // pred_fallthru
      _
    // Predicated region
    $region22: #{tpu_custom_call.1} parent=1 // pred_check
      _
    $region23: #{tpu_custom_call.1} parent=1 // pred_check_branch
      %122 = sbr.rel (0) target = $region25
    $region24: #{tpu_custom_call.1} parent=1 // pred_region
      _
    $region25: #{tpu_custom_call.1} parent=1 // pred_fallthru
      _
    %123 = vsyncpa [#allocation3], 1
    %124 = vsyncpa [#allocation5], 1

</llo_original>
